<compile_context>
chip_gen: v5e
topology: v5e:2x2
jax: 0.10.0
libtpu: 0.0.40
codegen_flags: <defaults>
</compile_context>

<pallas_src>
import jax
import jax.numpy as jnp
from jax import lax
from jax.experimental import pallas as pl
from jax.experimental.pallas import tpu as pltpu

_BN_EPS = 1e-5  # PyTorch BatchNorm1d default


def _round_up(n, m):
    return ((n + m - 1) // m) * m


def _make_kernel(n_rows, tile_rows):
    inv_n = 1.0 / float(n_rows)

    def kernel(x_ref, w1_ref, g1_ref, be1_ref, w2_ref, g2_ref, be2_ref,
               w3_ref, b3_ref, out_ref,
               h1_buf, h2_buf, s1a, s1b, s2a, s2b):
        p = pl.program_id(0)   # phase: 0 / 1 / 2
        i = pl.program_id(1)   # batch tile
        col0 = pl.multiple_of(i * tile_rows, tile_rows)

        @pl.when(jnp.logical_and(p == 0, i == 0))
        def _init():
            s1a[...] = jnp.zeros_like(s1a)
            s1b[...] = jnp.zeros_like(s1b)
            s2a[...] = jnp.zeros_like(s2a)
            s2b[...] = jnp.zeros_like(s2b)
            out_ref[...] = jnp.zeros_like(out_ref)   # defensive init of block (0,0)

        # ---- phase 0: h1 = x @ W1 (transposed store) ; accumulate BN1 sum/sumsq ----
        @pl.when(p == 0)
        def _phase0():
            # Linear bias b1 omitted: cancelled exactly by batch-stat BatchNorm.
            # LeakyReLU(True) => negative_slope 1.0 => identity (no op).
            h1 = jnp.dot(x_ref[...], w1_ref[...],
                         preferred_element_type=jnp.float32)       # (tm, d4)
            h1_t = jnp.transpose(h1)                               # (d4, tm) lane-dense
            h1_buf[:, pl.ds(col0, tile_rows)] = h1_t               # unmasked full-lane vst
            # Zero-padded x rows produce h1 == 0, so they add nothing here.
            s1a[...] += jnp.sum(h1_t, axis=1, keepdims=True)
            s1b[...] += jnp.sum(h1_t * h1_t, axis=1, keepdims=True)

        # ---- phase 1: BN1 normalize ; h2 = W2 @ h1n ; accumulate BN2 stats ----
        @pl.when(p == 1)
        def _phase1():
            @pl.when(i == 0)
            def _finalize_bn1():
                # NOTE: single-pass variance (E[h^2]-mean^2), clamped >= 0; can lose
                # precision vs PyTorch's two-pass batch variance when |mean| >> std.
                mean = s1a[...] * inv_n
                var = jnp.maximum(s1b[...] * inv_n - mean * mean, 0.0)
                scale = g1_ref[...] * lax.rsqrt(var + _BN_EPS)
                s1b[...] = scale
                s1a[...] = be1_ref[...] - mean * scale

            h1_t = h1_buf[:, pl.ds(col0, tile_rows)]               # (d4, tm)
            # Mask padded batch columns (global index >= n_rows) so the BN shift does
            # not leak into BN2 statistics.
            col_valid = (col0 + lax.broadcasted_iota(
                jnp.int32, (1, tile_rows), 1)) < n_rows
            h1n = jnp.where(col_valid, h1_t * s1b[...] + s1a[...], 0.0)
            # TODO(synk): Dropout(args.G_drop1) is eval-mode identity here.
            # Linear bias b2 omitted (cancelled by BN2); LeakyReLU(True) identity.
            h2_t = jnp.dot(w2_ref[...], h1n,
                           preferred_element_type=jnp.float32)     # (d8, tm)
            h2_buf[:, pl.ds(col0, tile_rows)] = h2_t
            s2a[...] += jnp.sum(h2_t, axis=1, keepdims=True)
            s2b[...] += jnp.sum(h2_t * h2_t, axis=1, keepdims=True)

        # ---- phase 2: BN2 normalize ; head Linear(d8,1) + Sigmoid ; lane-dense out ----
        @pl.when(p == 2)
        def _phase2():
            @pl.when(i == 0)
            def _finalize_bn2():
                mean = s2a[...] * inv_n
                var = jnp.maximum(s2b[...] * inv_n - mean * mean, 0.0)
                scale = g2_ref[...] * lax.rsqrt(var + _BN_EPS)
                s2b[...] = scale
                s2a[...] = be2_ref[...] - mean * scale

            h2_t = h2_buf[:, pl.ds(col0, tile_rows)]               # (d8, tm)
            h2n = h2_t * s2b[...] + s2a[...]
            # TODO(synk): Dropout(args.G_drop2) is eval-mode identity here.
            # Head: VPU multiply + small sublane reduce -> already lane-dense (1, tm).
            logits = jnp.sum(h2n * w3_ref[...], axis=0, keepdims=True) + b3_ref[...]
            out_ref[...] = 100.0 * jax.nn.sigmoid(logits)

    return kernel


def discriminator_forward(x, params, *, tile_rows=None, vmem_limit_bytes=None):
    """x: (N, dim) array. Returns (N,) float32, like output.view(-1)."""
    N, dim = x.shape
    assert dim % 8 == 0, "dim must be divisible by 8 (dim/4, dim/8 layers)"
    d4, d8 = dim // 4, dim // 8
    w1, g1, be1, w2t, g2, be2, w3, b3 = params

    # Generation-aware VMEM budget (v5e/v6e: 128 MiB, v7x: 64 MiB physical).
    if vmem_limit_bytes is None:
        try:
            cap = int(pltpu.get_tpu_info().vmem_capacity_bytes)
        except Exception:
            cap = 64 * 1024 * 1024  # conservative (v7x-sized) fallback
        vmem_limit_bytes = int(min(max(cap - (16 << 20), 32 << 20), 112 << 20))

    # Batch-tile rows: ~2 MiB f32 x tiles, multiple of 128 lanes, clamped.
    if tile_rows is None:
        tile_rows = min(4096, (2 << 20) // (dim * 4))
    tm = min(int(tile_rows), _round_up(N, 128))
    tm = max(128, (tm // 128) * 128)

    def _budget(tm_, np_):
        h_bytes = 4 * np_ * (d4 + d8)                 # lane-dense h1/h2 scratch
        x_bufs = 2 * tm_ * dim * 4                    # double-buffered x tile
        misc = (2 * tm_ * 4 + 4 * (dim * d4 + d8 * d4)
                + 4 * 512 * (d4 + d8) + (1 << 20))    # out bufs, weights, stats, slack
        return h_bytes + x_bufs + misc

    while True:
        n_tiles = pl.cdiv(N, tm)
        Np = n_tiles * tm
        if _budget(tm, Np) <= vmem_limit_bytes or tm == 128:
            break
        tm = max(128, ((tm // 2) // 128) * 128)

    if _budget(tm, Np) > vmem_limit_bytes:
        # TODO(synk): for very large N the persistent h1/h2 scratch should spill to HBM
        # (extra pl.ANY output re-streamed in phases 1-2); not implemented.
        raise ValueError("batch too large for VMEM-resident h1/h2 scratch on this TPU")

    # .float() semantics; zero-pad the batch to a whole number of tiles.
    x = x.astype(jnp.float32)
    if Np != N:
        x = jnp.pad(x, ((0, Np - N), (0, 0)))

    const = lambda arr: pl.BlockSpec(arr.shape, lambda p, i: (0, 0))
    # x only needed in phase 0: clamp to the LAST-fetched tile afterwards (no extra DMA).
    x_spec = pl.BlockSpec((tm, dim),
                          lambda p, i: (lax.select(p == 0, i, n_tiles - 1), 0))
    # Lane-dense output: one (1, tm) row per tile, only advanced during phase 2.
    out_spec = pl.BlockSpec((1, tm), lambda p, i: (0, lax.select(p == 2, i, 0)))

    flops = 2 * Np * dim * d4 + 2 * Np * d4 * d8 + 2 * Np * d8 + 6 * Np * (d4 + d8)
    bytes_accessed = (Np * dim * 4 + Np * 4 +
                      4 * (w1.size + w2t.size + w3.size + g1.size + be1.size +
                           g2.size + be2.size + b3.size))

    out2d = pl.pallas_call(
        _make_kernel(N, tm),
        out_shape=jax.ShapeDtypeStruct((1, Np), jnp.float32),
        grid_spec=pltpu.PrefetchScalarGridSpec(
            num_scalar_prefetch=0,
            grid=(3, n_tiles),  # (phase, batch tile); BN needs full-batch stats
            in_specs=[
                x_spec,
                const(w1), const(g1), const(be1),
                const(w2t), const(g2), const(be2),
                const(w3), const(b3),
            ],
            out_specs=out_spec,
            scratch_shapes=[
                pltpu.VMEM((d4, Np), jnp.float32),  # h1, transposed & lane-dense
                pltpu.VMEM((d8, Np), jnp.float32),  # h2, transposed & lane-dense
                pltpu.VMEM((d4, 1), jnp.float32),   # BN1 sum   -> shift
                pltpu.VMEM((d4, 1), jnp.float32),   # BN1 sumsq -> scale
                pltpu.VMEM((d8, 1), jnp.float32),   # BN2 sum   -> shift
                pltpu.VMEM((d8, 1), jnp.float32),   # BN2 sumsq -> scale
            ],
        ),
        compiler_params=pltpu.CompilerParams(
            dimension_semantics=("arbitrary", "arbitrary"),
            vmem_limit_bytes=vmem_limit_bytes,
        ),
        cost_estimate=pl.CostEstimate(
            flops=flops, transcendentals=Np, bytes_accessed=bytes_accessed),
    )(x, w1, g1, be1, w2t, g2, be2, w3, b3)

    return out2d[0, :N]


def discriminator_reference(x, params, b1, b2):
    """Pure-JAX reference keeping the explicit b1/b2 biases (verifies BN cancellation)."""
    w1, g1, be1, w2t, g2, be2, w3, b3 = params

    def bn(h, g, b):
        m = jnp.mean(h, axis=0, keepdims=True)
        v = jnp.mean((h - m) ** 2, axis=0, keepdims=True)  # biased variance
        return (h - m) * lax.rsqrt(v + _BN_EPS) * g + b

    h = x.astype(jnp.float32) @ w1 + b1            # Linear ; LeakyReLU(True) == identity
    h = bn(h, g1.reshape(1, -1), be1.reshape(1, -1))   # BatchNorm1d (train) ; Dropout eval
    h = h @ w2t.T + b2
    h = bn(h, g2.reshape(1, -1), be2.reshape(1, -1))
    logits = h @ w3 + b3.reshape(1, 1)             # w3 stored as a (d8, 1) column
    return (100.0 * jax.nn.sigmoid(logits)).reshape(-1)


def init_params(key, dim):
    d4, d8 = dim // 4, dim // 8
    ks = jax.random.split(key, 6)

    def linear(kw, kb, fan_in, fan_out):
        bound = fan_in ** -0.5  # PyTorch-like uniform bound
        w = jax.random.uniform(kw, (fan_in, fan_out), jnp.float32, -bound, bound)
        b = jax.random.uniform(kb, (1, fan_out), jnp.float32, -bound, bound)
        return w, b

    w1, b1 = linear(ks[0], ks[1], dim, d4)         # (dim, d4)
    w2, b2 = linear(ks[2], ks[3], d4, d8)
    w3c, b3 = linear(ks[4], ks[5], d8, 1)
    w2t = w2.T                                     # (d8, d4): kernel / PyTorch layout
    w3 = w3c                                       # (d8, 1): head as a column
    b3 = b3.reshape(1, 1)
    # BatchNorm affine params at construction: gamma=1, beta=0 (feature-on-sublane cols).
    g1, be1 = jnp.ones((d4, 1), jnp.float32), jnp.zeros((d4, 1), jnp.float32)
    g2, be2 = jnp.ones((d8, 1), jnp.float32), jnp.zeros((d8, 1), jnp.float32)
    params = (w1, g1, be1, w2t, g2, be2, w3, b3)
    return params, b1, b2


def _check(N, dim, tile_rows, key):
    k_x, k_p = jax.random.split(key)
    x = jax.random.normal(k_x, (N, dim), jnp.float32)
    params, b1, b2 = init_params(k_p, dim)
    out = jax.block_until_ready(
        discriminator_forward(x, params, tile_rows=tile_rows))
    ref = discriminator_reference(x, params, b1, b2)
    assert out.shape == (N,), out.shape
    assert bool(jnp.all(jnp.isfinite(out)))
    assert bool(jnp.all(out >= 0.0)) and bool(jnp.all(out <= 100.0))
    assert bool(jnp.allclose(out, ref, rtol=1e-3, atol=1e-2)), \
        float(jnp.max(jnp.abs(out - ref)))


if __name__ == "__main__":
    key = jax.random.PRNGKey(0)
    k1, k2 = jax.random.split(key)
    # dim=64 -> d4=16, d8=8.  Case 1: N not a multiple of the tile (padded + masked
    # last tile, 2 batch tiles).  Case 2: divisible N (single tile, no padding).
    _check(N=200, dim=64, tile_rows=128, key=k1)
    _check(N=256, dim=64, tile_rows=None, key=k2)
    print("KERNEL_OK")
</pallas_src>

<mosaic_0001>
module attributes {stable_mosaic.version = 11 : i64} {
  func.func @kernel(%arg0: i32, %arg1: i32, %arg2: memref<128x64xf32, #tpu.memory_space<vmem>>, %arg3: memref<64x16xf32, #tpu.memory_space<vmem>>, %arg4: memref<16x1xf32, #tpu.memory_space<vmem>>, %arg5: memref<16x1xf32, #tpu.memory_space<vmem>>, %arg6: memref<8x16xf32, #tpu.memory_space<vmem>>, %arg7: memref<8x1xf32, #tpu.memory_space<vmem>>, %arg8: memref<8x1xf32, #tpu.memory_space<vmem>>, %arg9: memref<8x1xf32, #tpu.memory_space<vmem>>, %arg10: memref<1x1xf32, #tpu.memory_space<vmem>>, %arg11: memref<1x128xf32, #tpu.memory_space<vmem>>, %arg12: memref<16x256xf32, #tpu.memory_space<vmem>>, %arg13: memref<8x256xf32, #tpu.memory_space<vmem>>, %arg14: memref<16x1xf32, #tpu.memory_space<vmem>>, %arg15: memref<16x1xf32, #tpu.memory_space<vmem>>, %arg16: memref<8x1xf32, #tpu.memory_space<vmem>>, %arg17: memref<8x1xf32, #tpu.memory_space<vmem>>) attributes {dimension_semantics = [#tpu.dimension_semantics<arbitrary>, #tpu.dimension_semantics<arbitrary>], iteration_bounds = array<i64: 3, 2>, scalar_prefetch = 0 : i64, scratch_operands = 6 : i64, tpu.core_type = #tpu.core_type<tc>, window_params = [{transform_indices = @transform_0, window_bounds = array<i64: 128, 64>}, {pipeline_mode = #tpu.pipeline_mode<synchronous>, transform_indices = @transform_1, window_bounds = array<i64: 64, 16>}, {pipeline_mode = #tpu.pipeline_mode<synchronous>, transform_indices = @transform_2, window_bounds = array<i64: 16, 1>}, {pipeline_mode = #tpu.pipeline_mode<synchronous>, transform_indices = @transform_3, window_bounds = array<i64: 16, 1>}, {pipeline_mode = #tpu.pipeline_mode<synchronous>, transform_indices = @transform_4, window_bounds = array<i64: 8, 16>}, {pipeline_mode = #tpu.pipeline_mode<synchronous>, transform_indices = @transform_5, window_bounds = array<i64: 8, 1>}, {pipeline_mode = #tpu.pipeline_mode<synchronous>, transform_indices = @transform_6, window_bounds = array<i64: 8, 1>}, {pipeline_mode = #tpu.pipeline_mode<synchronous>, transform_indices = @transform_7, window_bounds = array<i64: 8, 1>}, {pipeline_mode = #tpu.pipeline_mode<synchronous>, transform_indices = @transform_8, window_bounds = array<i64: 1, 1>}, {transform_indices = @transform_9, window_bounds = array<i64: 1, 128>}]} {
    %c128_i32 = arith.constant 128 : i32
    %0 = arith.muli %arg1, %c128_i32 : i32
    %1 = tpu.assume_multiple %0, 128 : i32
    %c0_i32 = arith.constant 0 : i32
    %2 = arith.cmpi eq, %arg0, %c0_i32 : i32
    %c0_i32_0 = arith.constant 0 : i32
    %3 = arith.cmpi eq, %arg1, %c0_i32_0 : i32
    %4 = arith.andi %2, %3 : i1
    %5 = arith.extui %4 : i1 to i32
    %c0_i32_1 = arith.constant 0 : i32
    %6 = arith.cmpi ne, %5, %c0_i32_1 : i32
    scf.if %6 {
      %cst = arith.constant 0.000000e+00 : f32
      %16 = vector.broadcast %cst : f32 to vector<16x1xf32>
      %c0 = arith.constant 0 : index
      %c0_6 = arith.constant 0 : index
      %17 = vector.load %arg14[%c0, %c0_6] : memref<16x1xf32, #tpu.memory_space<vmem>>, vector<16x1xf32>
      tpu.vector_store %arg14[%c0, %c0_6], %16 {strides = array<i32>} : memref<16x1xf32, #tpu.memory_space<vmem>>, vector<16x1xf32>,
      %cst_7 = arith.constant 0.000000e+00 : f32
      %18 = vector.broadcast %cst_7 : f32 to vector<16x1xf32>
      %c0_8 = arith.constant 0 : index
      %c0_9 = arith.constant 0 : index
      %19 = vector.load %arg15[%c0_8, %c0_9] : memref<16x1xf32, #tpu.memory_space<vmem>>, vector<16x1xf32>
      tpu.vector_store %arg15[%c0_8, %c0_9], %18 {strides = array<i32>} : memref<16x1xf32, #tpu.memory_space<vmem>>, vector<16x1xf32>,
      %cst_10 = arith.constant 0.000000e+00 : f32
      %20 = vector.broadcast %cst_10 : f32 to vector<8x1xf32>
      %c0_11 = arith.constant 0 : index
      %c0_12 = arith.constant 0 : index
      %21 = vector.load %arg16[%c0_11, %c0_12] : memref<8x1xf32, #tpu.memory_space<vmem>>, vector<8x1xf32>
      tpu.vector_store %arg16[%c0_11, %c0_12], %20 {strides = array<i32>} : memref<8x1xf32, #tpu.memory_space<vmem>>, vector<8x1xf32>,
      %cst_13 = arith.constant 0.000000e+00 : f32
      %22 = vector.broadcast %cst_13 : f32 to vector<8x1xf32>
      %c0_14 = arith.constant 0 : index
      %c0_15 = arith.constant 0 : index
      %23 = vector.load %arg17[%c0_14, %c0_15] : memref<8x1xf32, #tpu.memory_space<vmem>>, vector<8x1xf32>
      tpu.vector_store %arg17[%c0_14, %c0_15], %22 {strides = array<i32>} : memref<8x1xf32, #tpu.memory_space<vmem>>, vector<8x1xf32>,
      %cst_16 = arith.constant 0.000000e+00 : f32
      %24 = vector.broadcast %cst_16 : f32 to vector<1x128xf32>
      %c0_17 = arith.constant 0 : index
      %c0_18 = arith.constant 0 : index
      %25 = vector.load %arg11[%c0_17, %c0_18] : memref<1x128xf32, #tpu.memory_space<vmem>>, vector<1x128xf32>
      tpu.vector_store %arg11[%c0_17, %c0_18], %24 {strides = array<i32>} : memref<1x128xf32, #tpu.memory_space<vmem>>, vector<1x128xf32>,
    } else {
    }
    %c0_i32_2 = arith.constant 0 : i32
    %7 = arith.cmpi eq, %arg0, %c0_i32_2 : i32
    %8 = arith.extui %7 : i1 to i32
    %c0_i32_3 = arith.constant 0 : i32
    %9 = arith.cmpi ne, %8, %c0_i32_3 : i32
    scf.if %9 {
      %c0 = arith.constant 0 : index
      %c0_6 = arith.constant 0 : index
      %16 = vector.load %arg2[%c0, %c0_6] : memref<128x64xf32, #tpu.memory_space<vmem>>, vector<128x64xf32>
      %c0_7 = arith.constant 0 : index
      %c0_8 = arith.constant 0 : index
      %17 = vector.load %arg3[%c0_7, %c0_8] : memref<64x16xf32, #tpu.memory_space<vmem>>, vector<64x16xf32>
      %cst = arith.constant dense<0.000000e+00> : vector<128x16xf32>
      %18 = tpu.matmul %16, %17, %cst {dimension_numbers = #tpu.dot_dimension_numbers<[1], [0], [0], [1], [0, 0, 1, 1], [], []>} : vector<128x64xf32>, vector<64x16xf32>, vector<128x16xf32> -> vector<128x16xf32>
      %19 = tpu.transpose %18, [1, 0] : vector<128x16xf32> -> vector<16x128xf32>
      %c0_9 = arith.constant 0 : index
      %20 = arith.index_cast %1 : i32 to index
      %21 = vector.load %arg12[%c0_9, %20] : memref<16x256xf32, #tpu.memory_space<vmem>>, vector<16x128xf32>
      tpu.vector_store %arg12[%c0_9, %20], %19 {strides = array<i32>} : memref<16x256xf32, #tpu.memory_space<vmem>>, vector<16x128xf32>,
      %c0_10 = arith.constant 0 : index
      %c0_11 = arith.constant 0 : index
      %22 = vector.load %arg14[%c0_10, %c0_11] : memref<16x1xf32, #tpu.memory_space<vmem>>, vector<16x1xf32>
      %cst_12 = arith.constant dense<0.000000e+00> : vector<16xf32>
      %23 = vector.multi_reduction <add>, %19, %cst_12 [1] : vector<16x128xf32> to vector<16xf32>
      %24 = vector.shape_cast %23 : vector<16xf32> to vector<16x1xf32>
      %25 = arith.addf %22, %24 : vector<16x1xf32>
      %c0_13 = arith.constant 0 : index
      %c0_14 = arith.constant 0 : index
      %26 = vector.load %arg14[%c0_13, %c0_14] : memref<16x1xf32, #tpu.memory_space<vmem>>, vector<16x1xf32>
      tpu.vector_store %arg14[%c0_13, %c0_14], %25 {strides = array<i32>} : memref<16x1xf32, #tpu.memory_space<vmem>>, vector<16x1xf32>,
      %c0_15 = arith.constant 0 : index
      %c0_16 = arith.constant 0 : index
      %27 = vector.load %arg15[%c0_15, %c0_16] : memref<16x1xf32, #tpu.memory_space<vmem>>, vector<16x1xf32>
      %28 = arith.mulf %19, %19 : vector<16x128xf32>
      %cst_17 = arith.constant dense<0.000000e+00> : vector<16xf32>
      %29 = vector.multi_reduction <add>, %28, %cst_17 [1] : vector<16x128xf32> to vector<16xf32>
      %30 = vector.shape_cast %29 : vector<16xf32> to vector<16x1xf32>
      %31 = arith.addf %27, %30 : vector<16x1xf32>
      %c0_18 = arith.constant 0 : index
      %c0_19 = arith.constant 0 : index
      %32 = vector.load %arg15[%c0_18, %c0_19] : memref<16x1xf32, #tpu.memory_space<vmem>>, vector<16x1xf32>
      tpu.vector_store %arg15[%c0_18, %c0_19], %31 {strides = array<i32>} : memref<16x1xf32, #tpu.memory_space<vmem>>, vector<16x1xf32>,
    } else {
    }
    %c1_i32 = arith.constant 1 : i32
    %10 = arith.cmpi eq, %arg0, %c1_i32 : i32
    %11 = arith.extui %10 : i1 to i32
    %c0_i32_4 = arith.constant 0 : i32
    %12 = arith.cmpi ne, %11, %c0_i32_4 : i32
    scf.if %12 {
      %c0_i32_6 = arith.constant 0 : i32
      %16 = arith.cmpi eq, %arg1, %c0_i32_6 : i32
      %17 = arith.extui %16 : i1 to i32
      %c0_i32_7 = arith.constant 0 : i32
      %18 = arith.cmpi ne, %17, %c0_i32_7 : i32
      scf.if %18 {
        %c0_26 = arith.constant 0 : index
        %c0_27 = arith.constant 0 : index
        %51 = vector.load %arg14[%c0_26, %c0_27] : memref<16x1xf32, #tpu.memory_space<vmem>>, vector<16x1xf32>
        %cst_28 = arith.constant 5.000000e-03 : f32
        %52 = vector.broadcast %cst_28 : f32 to vector<16x1xf32>
        %53 = arith.mulf %51, %52 : vector<16x1xf32>
        %c0_29 = arith.constant 0 : index
        %c0_30 = arith.constant 0 : index
        %54 = vector.load %arg15[%c0_29, %c0_30] : memref<16x1xf32, #tpu.memory_space<vmem>>, vector<16x1xf32>
        %cst_31 = arith.constant 5.000000e-03 : f32
        %55 = vector.broadcast %cst_31 : f32 to vector<16x1xf32>
        %56 = arith.mulf %54, %55 : vector<16x1xf32>
        %57 = arith.mulf %53, %53 : vector<16x1xf32>
        %58 = arith.subf %56, %57 : vector<16x1xf32>
        %cst_32 = arith.constant 0.000000e+00 : f32
        %59 = vector.broadcast %cst_32 : f32 to vector<16x1xf32>
        %60 = arith.maximumf %58, %59 : vector<16x1xf32>
        %c0_33 = arith.constant 0 : index
        %c0_34 = arith.constant 0 : index
        %61 = vector.load %arg4[%c0_33, %c0_34] : memref<16x1xf32, #tpu.memory_space<vmem>>, vector<16x1xf32>
        %cst_35 = arith.constant 9.99999974E-6 : f32
        %62 = vector.broadcast %cst_35 : f32 to vector<16x1xf32>
        %63 = arith.addf %60, %62 : vector<16x1xf32>
        %64 = math.rsqrt %63 : vector<16x1xf32>
        %65 = arith.mulf %61, %64 : vector<16x1xf32>
        %c0_36 = arith.constant 0 : index
        %c0_37 = arith.constant 0 : index
        %66 = vector.load %arg15[%c0_36, %c0_37] : memref<16x1xf32, #tpu.memory_space<vmem>>, vector<16x1xf32>
        tpu.vector_store %arg15[%c0_36, %c0_37], %65 {strides = array<i32>} : memref<16x1xf32, #tpu.memory_space<vmem>>, vector<16x1xf32>,
        %c0_38 = arith.constant 0 : index
        %c0_39 = arith.constant 0 : index
        %67 = vector.load %arg5[%c0_38, %c0_39] : memref<16x1xf32, #tpu.memory_space<vmem>>, vector<16x1xf32>
        %68 = arith.mulf %53, %65 : vector<16x1xf32>
        %69 = arith.subf %67, %68 : vector<16x1xf32>
        %c0_40 = arith.constant 0 : index
        %c0_41 = arith.constant 0 : index
        %70 = vector.load %arg14[%c0_40, %c0_41] : memref<16x1xf32, #tpu.memory_space<vmem>>, vector<16x1xf32>
        tpu.vector_store %arg14[%c0_40, %c0_41], %69 {strides = array<i32>} : memref<16x1xf32, #tpu.memory_space<vmem>>, vector<16x1xf32>,
      } else {
      }
      %c0 = arith.constant 0 : index
      %19 = arith.index_cast %1 : i32 to index
      %20 = vector.load %arg12[%c0, %19] : memref<16x256xf32, #tpu.memory_space<vmem>>, vector<16x128xf32>
      %21 = tpu.iota {dimensions = array<i32: 1>} : vector<1x128xi32>
      %22 = vector.broadcast %1 : i32 to vector<1x128xi32>
      %23 = arith.addi %22, %21 : vector<1x128xi32>
      %c200_i32 = arith.constant 200 : i32
      %24 = vector.broadcast %c200_i32 : i32 to vector<1x128xi32>
      %25 = arith.cmpi slt, %23, %24 : vector<1x128xi32>
      %c0_8 = arith.constant 0 : index
      %c0_9 = arith.constant 0 : index
      %26 = vector.load %arg15[%c0_8, %c0_9] : memref<16x1xf32, #tpu.memory_space<vmem>>, vector<16x1xf32>
      %27 = vector.broadcast %26 : vector<16x1xf32> to vector<16x128xf32>
      %28 = arith.mulf %20, %27 : vector<16x128xf32>
      %c0_10 = arith.constant 0 : index
      %c0_11 = arith.constant 0 : index
      %29 = vector.load %arg14[%c0_10, %c0_11] : memref<16x1xf32, #tpu.memory_space<vmem>>, vector<16x1xf32>
      %30 = vector.broadcast %29 : vector<16x1xf32> to vector<16x128xf32>
      %31 = arith.addf %28, %30 : vector<16x128xf32>
      %cst = arith.constant 0.000000e+00 : f32
      %32 = vector.shape_cast %25 : vector<1x128xi1> to vector<1x128xi1>
      %33 = vector.broadcast %32 : vector<1x128xi1> to vector<16x128xi1>
      %34 = vector.broadcast %cst : f32 to vector<16x128xf32>
      %35 = arith.select %33, %31, %34 : vector<16x128xi1>, vector<16x128xf32>
      %c0_12 = arith.constant 0 : index
      %c0_13 = arith.constant 0 : index
      %36 = vector.load %arg6[%c0_12, %c0_13] : memref<8x16xf32, #tpu.memory_space<vmem>>, vector<8x16xf32>
      %cst_14 = arith.constant dense<0.000000e+00> : vector<8x128xf32>
      %37 = tpu.matmul %36, %35, %cst_14 {dimension_numbers = #tpu.dot_dimension_numbers<[1], [0], [0], [1], [0, 0, 1, 1], [], []>} : vector<8x16xf32>, vector<16x128xf32>, vector<8x128xf32> -> vector<8x128xf32>
      %c0_15 = arith.constant 0 : index
      %38 = arith.index_cast %1 : i32 to index
      %39 = vector.load %arg13[%c0_15, %38] : memref<8x256xf32, #tpu.memory_space<vmem>>, vector<8x128xf32>
      tpu.vector_store %arg13[%c0_15, %38], %37 {strides = array<i32>} : memref<8x256xf32, #tpu.memory_space<vmem>>, vector<8x128xf32>,
      %c0_16 = arith.constant 0 : index
      %c0_17 = arith.constant 0 : index
      %40 = vector.load %arg16[%c0_16, %c0_17] : memref<8x1xf32, #tpu.memory_space<vmem>>, vector<8x1xf32>
      %cst_18 = arith.constant dense<0.000000e+00> : vector<8xf32>
      %41 = vector.multi_reduction <add>, %37, %cst_18 [1] : vector<8x128xf32> to vector<8xf32>
      %42 = vector.shape_cast %41 : vector<8xf32> to vector<8x1xf32>
      %43 = arith.addf %40, %42 : vector<8x1xf32>
      %c0_19 = arith.constant 0 : index
      %c0_20 = arith.constant 0 : index
      %44 = vector.load %arg16[%c0_19, %c0_20] : memref<8x1xf32, #tpu.memory_space<vmem>>, vector<8x1xf32>
      tpu.vector_store %arg16[%c0_19, %c0_20], %43 {strides = array<i32>} : memref<8x1xf32, #tpu.memory_space<vmem>>, vector<8x1xf32>,
      %c0_21 = arith.constant 0 : index
      %c0_22 = arith.constant 0 : index
      %45 = vector.load %arg17[%c0_21, %c0_22] : memref<8x1xf32, #tpu.memory_space<vmem>>, vector<8x1xf32>
      %46 = arith.mulf %37, %37 : vector<8x128xf32>
      %cst_23 = arith.constant dense<0.000000e+00> : vector<8xf32>
      %47 = vector.multi_reduction <add>, %46, %cst_23 [1] : vector<8x128xf32> to vector<8xf32>
      %48 = vector.shape_cast %47 : vector<8xf32> to vector<8x1xf32>
      %49 = arith.addf %45, %48 : vector<8x1xf32>
      %c0_24 = arith.constant 0 : index
      %c0_25 = arith.constant 0 : index
      %50 = vector.load %arg17[%c0_24, %c0_25] : memref<8x1xf32, #tpu.memory_space<vmem>>, vector<8x1xf32>
      tpu.vector_store %arg17[%c0_24, %c0_25], %49 {strides = array<i32>} : memref<8x1xf32, #tpu.memory_space<vmem>>, vector<8x1xf32>,
    } else {
    }
    %c2_i32 = arith.constant 2 : i32
    %13 = arith.cmpi eq, %arg0, %c2_i32 : i32
    %14 = arith.extui %13 : i1 to i32
    %c0_i32_5 = arith.constant 0 : i32
    %15 = arith.cmpi ne, %14, %c0_i32_5 : i32
    scf.if %15 {
      %c0_i32_6 = arith.constant 0 : i32
      %16 = arith.cmpi eq, %arg1, %c0_i32_6 : i32
      %17 = arith.extui %16 : i1 to i32
      %c0_i32_7 = arith.constant 0 : i32
      %18 = arith.cmpi ne, %17, %c0_i32_7 : i32
      scf.if %18 {
        %c0_20 = arith.constant 0 : index
        %c0_21 = arith.constant 0 : index
        %43 = vector.load %arg16[%c0_20, %c0_21] : memref<8x1xf32, #tpu.memory_space<vmem>>, vector<8x1xf32>
        %cst_22 = arith.constant 5.000000e-03 : f32
        %44 = vector.broadcast %cst_22 : f32 to vector<8x1xf32>
        %45 = arith.mulf %43, %44 : vector<8x1xf32>
        %c0_23 = arith.constant 0 : index
        %c0_24 = arith.constant 0 : index
        %46 = vector.load %arg17[%c0_23, %c0_24] : memref<8x1xf32, #tpu.memory_space<vmem>>, vector<8x1xf32>
        %cst_25 = arith.constant 5.000000e-03 : f32
        %47 = vector.broadcast %cst_25 : f32 to vector<8x1xf32>
        %48 = arith.mulf %46, %47 : vector<8x1xf32>
        %49 = arith.mulf %45, %45 : vector<8x1xf32>
        %50 = arith.subf %48, %49 : vector<8x1xf32>
        %cst_26 = arith.constant 0.000000e+00 : f32
        %51 = vector.broadcast %cst_26 : f32 to vector<8x1xf32>
        %52 = arith.maximumf %50, %51 : vector<8x1xf32>
        %c0_27 = arith.constant 0 : index
        %c0_28 = arith.constant 0 : index
        %53 = vector.load %arg7[%c0_27, %c0_28] : memref<8x1xf32, #tpu.memory_space<vmem>>, vector<8x1xf32>
        %cst_29 = arith.constant 9.99999974E-6 : f32
        %54 = vector.broadcast %cst_29 : f32 to vector<8x1xf32>
        %55 = arith.addf %52, %54 : vector<8x1xf32>
        %56 = math.rsqrt %55 : vector<8x1xf32>
        %57 = arith.mulf %53, %56 : vector<8x1xf32>
        %c0_30 = arith.constant 0 : index
        %c0_31 = arith.constant 0 : index
        %58 = vector.load %arg17[%c0_30, %c0_31] : memref<8x1xf32, #tpu.memory_space<vmem>>, vector<8x1xf32>
        tpu.vector_store %arg17[%c0_30, %c0_31], %57 {strides = array<i32>} : memref<8x1xf32, #tpu.memory_space<vmem>>, vector<8x1xf32>,
        %c0_32 = arith.constant 0 : index
        %c0_33 = arith.constant 0 : index
        %59 = vector.load %arg8[%c0_32, %c0_33] : memref<8x1xf32, #tpu.memory_space<vmem>>, vector<8x1xf32>
        %60 = arith.mulf %45, %57 : vector<8x1xf32>
        %61 = arith.subf %59, %60 : vector<8x1xf32>
        %c0_34 = arith.constant 0 : index
        %c0_35 = arith.constant 0 : index
        %62 = vector.load %arg16[%c0_34, %c0_35] : memref<8x1xf32, #tpu.memory_space<vmem>>, vector<8x1xf32>
        tpu.vector_store %arg16[%c0_34, %c0_35], %61 {strides = array<i32>} : memref<8x1xf32, #tpu.memory_space<vmem>>, vector<8x1xf32>,
      } else {
      }
      %c0 = arith.constant 0 : index
      %19 = arith.index_cast %1 : i32 to index
      %20 = vector.load %arg13[%c0, %19] : memref<8x256xf32, #tpu.memory_space<vmem>>, vector<8x128xf32>
      %c0_8 = arith.constant 0 : index
      %c0_9 = arith.constant 0 : index
      %21 = vector.load %arg17[%c0_8, %c0_9] : memref<8x1xf32, #tpu.memory_space<vmem>>, vector<8x1xf32>
      %22 = vector.broadcast %21 : vector<8x1xf32> to vector<8x128xf32>
      %23 = arith.mulf %20, %22 : vector<8x128xf32>
      %c0_10 = arith.constant 0 : index
      %c0_11 = arith.constant 0 : index
      %24 = vector.load %arg16[%c0_10, %c0_11] : memref<8x1xf32, #tpu.memory_space<vmem>>, vector<8x1xf32>
      %25 = vector.broadcast %24 : vector<8x1xf32> to vector<8x128xf32>
      %26 = arith.addf %23, %25 : vector<8x128xf32>
      %c0_12 = arith.constant 0 : index
      %c0_13 = arith.constant 0 : index
      %27 = vector.load %arg9[%c0_12, %c0_13] : memref<8x1xf32, #tpu.memory_space<vmem>>, vector<8x1xf32>
      %28 = vector.broadcast %27 : vector<8x1xf32> to vector<8x128xf32>
      %29 = arith.mulf %26, %28 : vector<8x128xf32>
      %cst = arith.constant dense<0.000000e+00> : vector<128xf32>
      %30 = vector.multi_reduction <add>, %29, %cst [0] : vector<8x128xf32> to vector<128xf32>
      %31 = vector.shape_cast %30 : vector<128xf32> to vector<1x128xf32>
      %c0_14 = arith.constant 0 : index
      %c0_15 = arith.constant 0 : index
      %32 = vector.load %arg10[%c0_14, %c0_15] : memref<1x1xf32, #tpu.memory_space<vmem>>, vector<1x1xf32>
      %33 = vector.broadcast %32 : vector<1x1xf32> to vector<1x128xf32>
      %34 = arith.addf %31, %33 : vector<1x128xf32>
      %35 = arith.negf %34 : vector<1x128xf32>
      %36 = math.exp %35 : vector<1x128xf32>
      %cst_16 = arith.constant 1.000000e+00 : f32
      %37 = vector.broadcast %cst_16 : f32 to vector<1x128xf32>
      %38 = arith.addf %37, %36 : vector<1x128xf32>
      %39 = arith.divf %37, %38 : vector<1x128xf32>
      %cst_17 = arith.constant 1.000000e+02 : f32
      %40 = vector.broadcast %cst_17 : f32 to vector<1x128xf32>
      %41 = arith.mulf %40, %39 : vector<1x128xf32>
      %c0_18 = arith.constant 0 : index
      %c0_19 = arith.constant 0 : index
      %42 = vector.load %arg11[%c0_18, %c0_19] : memref<1x128xf32, #tpu.memory_space<vmem>>, vector<1x128xf32>
      tpu.vector_store %arg11[%c0_18, %c0_19], %41 {strides = array<i32>} : memref<1x128xf32, #tpu.memory_space<vmem>>, vector<1x128xf32>,
    } else {
    }
    return
  }
  func.func @transform_0(%arg0: i32, %arg1: i32) -> (i32, i32) {
    %c0_i32 = arith.constant 0 : i32
    %0 = arith.cmpi eq, %arg0, %c0_i32 : i32
    %c1_i32 = arith.constant 1 : i32
    %1 = arith.select %0, %arg1, %c1_i32 : i32
    %c0_i32_0 = arith.constant 0 : i32
    %c0_i32_1 = arith.constant 0 : i32
    return %1, %c0_i32_0 : i32, i32
  }
  func.func @transform_1(%arg0: i32, %arg1: i32) -> (i32, i32) {
    %c0_i32 = arith.constant 0 : i32
    %c0_i32_0 = arith.constant 0 : i32
    %c0_i32_1 = arith.constant 0 : i32
    return %c0_i32, %c0_i32_0 : i32, i32
  }
  func.func @transform_2(%arg0: i32, %arg1: i32) -> (i32, i32) {
    %c0_i32 = arith.constant 0 : i32
    %c0_i32_0 = arith.constant 0 : i32
    %c0_i32_1 = arith.constant 0 : i32
    return %c0_i32, %c0_i32_0 : i32, i32
  }
  func.func @transform_3(%arg0: i32, %arg1: i32) -> (i32, i32) {
    %c0_i32 = arith.constant 0 : i32
    %c0_i32_0 = arith.constant 0 : i32
    %c0_i32_1 = arith.constant 0 : i32
    return %c0_i32, %c0_i32_0 : i32, i32
  }
  func.func @transform_4(%arg0: i32, %arg1: i32) -> (i32, i32) {
    %c0_i32 = arith.constant 0 : i32
    %c0_i32_0 = arith.constant 0 : i32
    %c0_i32_1 = arith.constant 0 : i32
    return %c0_i32, %c0_i32_0 : i32, i32
  }
  func.func @transform_5(%arg0: i32, %arg1: i32) -> (i32, i32) {
    %c0_i32 = arith.constant 0 : i32
    %c0_i32_0 = arith.constant 0 : i32
    %c0_i32_1 = arith.constant 0 : i32
    return %c0_i32, %c0_i32_0 : i32, i32
  }
  func.func @transform_6(%arg0: i32, %arg1: i32) -> (i32, i32) {
    %c0_i32 = arith.constant 0 : i32
    %c0_i32_0 = arith.constant 0 : i32
    %c0_i32_1 = arith.constant 0 : i32
    return %c0_i32, %c0_i32_0 : i32, i32
  }
  func.func @transform_7(%arg0: i32, %arg1: i32) -> (i32, i32) {
    %c0_i32 = arith.constant 0 : i32
    %c0_i32_0 = arith.constant 0 : i32
    %c0_i32_1 = arith.constant 0 : i32
    return %c0_i32, %c0_i32_0 : i32, i32
  }
  func.func @transform_8(%arg0: i32, %arg1: i32) -> (i32, i32) {
    %c0_i32 = arith.constant 0 : i32
    %c0_i32_0 = arith.constant 0 : i32
    %c0_i32_1 = arith.constant 0 : i32
    return %c0_i32, %c0_i32_0 : i32, i32
  }
  func.func @transform_9(%arg0: i32, %arg1: i32) -> (i32, i32) {
    %c2_i32 = arith.constant 2 : i32
    %0 = arith.cmpi eq, %arg0, %c2_i32 : i32
    %c0_i32 = arith.constant 0 : i32
    %1 = arith.select %0, %arg1, %c0_i32 : i32
    %c0_i32_0 = arith.constant 0 : i32
    %c0_i32_1 = arith.constant 0 : i32
    return %c0_i32_0, %1 : i32, i32
  }
}

</mosaic_0001>

<llo_original>
// kernel: tpu_custom_call.1
$region0: #{tpu_custom_call.1}
  #allocation0 [shape = 'u32[]', space=smem, size = 0x4, offset = 0x4, fixed_abs, tag = 'smem constant byte address 0x4 - core index']
  #allocation1 [shape = 'u32[72,128]{1,0:T(1,128)}', space=vmem, size = 0x9000, scoped, tag = 'internal scratch']
  #allocation2 [shape = 'f32[16,256]{1,0:T(8,128)}', space=vmem, size = 0x4000, scoped, tag = 'scratch operand']
  #allocation3 [shape = 'f32[8,256]{1,0:T(8,128)}', space=vmem, size = 0x2000, scoped, tag = 'scratch operand']
  #allocation4 [shape = 'f32[16,1]{1,0:T(8,128)}', space=vmem, size = 0x2000, scoped, tag = 'scratch operand']
  #allocation5 [shape = 'f32[16,1]{1,0:T(8,128)}', space=vmem, size = 0x2000, scoped, tag = 'scratch operand']
  #allocation6 [shape = 'f32[8,1]{1,0:T(8,128)}', space=vmem, size = 0x1000, scoped, tag = 'scratch operand']
  #allocation7 [shape = 'f32[8,1]{1,0:T(8,128)}', space=vmem, size = 0x1000, scoped, tag = 'scratch operand']
  #allocation8 [shape = 'f32[1,1]{1,0:T(1,128)S(1)}', space=vmem, size = 0x200, scoped, tag = 'scoped memory for tpu_custom_call.1']
  %s0 = inlined_call_operand.vmem [shape: f32[256,64], index: 0, kind: input, shape index: {}]
  %s1 = inlined_call_operand.vmem [shape: f32[64,16], index: 1, kind: input, shape index: {}]
  %s2 = inlined_call_operand.vmem [shape: f32[16,1], index: 2, kind: input, shape index: {}]
  %s3 = inlined_call_operand.vmem [shape: f32[16,1], index: 3, kind: input, shape index: {}]
  %s4 = inlined_call_operand.vmem [shape: f32[8,16], index: 4, kind: input, shape index: {}]
  %s5 = inlined_call_operand.vmem [shape: f32[8,1], index: 5, kind: input, shape index: {}]
  %s6 = inlined_call_operand.vmem [shape: f32[8,1], index: 6, kind: input, shape index: {}]
  %s7 = inlined_call_operand.vmem [shape: f32[8,1], index: 7, kind: input, shape index: {}]
  %s8 = inlined_call_operand.<no memory space> [shape: f32[1,1], index: 8, kind: input, shape index: {}]
  %s9 = inlined_call_operand.hbm [shape: f32[1,256], index: 9, kind: output, shape index: {}]
  %s10 = sld [smem:[#allocation0]]
  $region93: #{tpu_custom_call.1} parent=0
    _
  %s12 = ssub.s32 1, %s10
  %s13 = scalar_select 0, %s12, %s10
  %v14 = vstv %s8
  %15 = vst [vmem:[#allocation8] sm:$0x1] %v14
  $region1: #{tpu_custom_call.1} parent=0
    #allocation9 [shape = 'u8[1024]{0}', space=vmem, size = 0x400, scoped, tag = 'output window, operand 0']
    #allocation10 [shape = 's32[2]{0}', space=sflag, size = 0x8, scoped, tag = 'scoped memory for tpu_custom_call.1']
    %16 = vsyncpa [#allocation10], 0
    %s17 = scalar_lea.sflag [#allocation10], 1
    %18 = vsyncpa %s17, 0
    loop: start=0, step=1, limit=8
    $region2: #{tpu_custom_call.1} parent=1 // loop_pre_header
      _
    $region3: #{tpu_custom_call.1} parent=1 // loop_header
      %s20 = sphi 0, %s24
      %p21 = scmp.ge.s32.totalorder %s20, 8
      %s27 = sphi 0, %s39
      %s28 = sphi 0, %s35
      %s29 = sphi 0, %s27
      %s30 = sphi 0, %s28
      %s31 = sphi 0, %s29
      %s32 = sphi 0, %s30
      %s46 = sphi 0, %s48
      %s49 = sphi 0, %s46
      %s50 = sphi 0, %s49
      %s66 = sphi 0, %s50
      %s70 = sphi 0, %s70
      %s72 = sphi 0, %s70
      %s73 = sphi 0, %s72
      %s87 = sphi 0, %s73
      %s91 = sphi 0, %s91
      %s93 = sphi 0, %s91
      %s94 = sphi 0, %s93
      %s108 = sphi 0, %s94
      %s112 = sphi 0, %s112
      %s114 = sphi 0, %s112
      %s115 = sphi 0, %s114
      %s129 = sphi 0, %s115
      %s133 = sphi 0, %s133
      %s135 = sphi 0, %s133
      %s136 = sphi 0, %s135
      %s150 = sphi 0, %s136
      %s154 = sphi 0, %s154
      %s156 = sphi 0, %s154
      %s157 = sphi 0, %s156
      %s171 = sphi 0, %s157
      %s175 = sphi 0, %s175
      %s177 = sphi 0, %s175
      %s178 = sphi 0, %s177
      %s192 = sphi 0, %s178
      %s196 = sphi 0, %s196
      %s198 = sphi 0, %s196
      %s199 = sphi 0, %s198
      %s213 = sphi 0, %s199
      %s217 = sphi 0, %s217
      %s219 = sphi 0, %s217
      %s220 = sphi 0, %s219
      %s234 = sphi 0, %s220
      %s244 = sphi 0, %s246
      %s247 = sphi 0, %s244
      %s248 = sphi 0, %s247
      %s264 = sphi 0, %s248
    $region4: #{tpu_custom_call.1} parent=1 // loop_header_branch
      %23 = sbr.rel (%p21) target = $region8
    $region5: #{tpu_custom_call.1} parent=1 // loop_body
      %s25 = ssub.s32 %s20, 1
      %s26 = ssub.s32 %s20, 2
      %s33 = sadd.s32 1, %s28
      %p34 = scmp.ge.s32.totalorder %s33, 2
      %s35 = scalar_select %p34, 0, %s33
      %s36 = sadd.s32 1, %s27
      %s37 = scalar_select %p34, %s36, %s27
      %p38 = scmp.ge.s32.totalorder %s37, 3
      %s39 = scalar_select %p38, 0, %s37
      %p40 = scmp.eq.s32.totalorder %s27, 0
      %s41 = scalar_select %p40, %s28, 1
      %p42 = scmp.eq.s32.totalorder %s39, 0
      %s43 = scalar_select %p42, %s35, 1
      %s44 = ssub.s32 %s41, %s43
      %p45 = scmp.eq.s32.totalorder %s44, 0
      %s47 = sadd.s32 %s46, 1
      %s48 = scalar_select %p45, %s46, %s47
      %p51 = pneg %p45
      %p52 = scmp.eq.s32.totalorder %s20, 5
      %p53 = por %p51, %p52
      %p54 = scmp.ne.s32.totalorder %s46, %s49
      %p55 = scmp.eq.s32.totalorder %s20, 0
      %p56 = por %p54, %p55
      %p57 = scmp.ne.s32.totalorder %s46, %s49
      %p58 = scmp.eq.s32.totalorder %s25, 5
      %p59 = por %p57, %p58
      %p60 = scmp.ne.s32.totalorder %s49, %s50
      %p61 = scmp.eq.s32.totalorder %s25, 0
      %p62 = por %p60, %p61
      %p63 = scmp.ne.s32.totalorder %s49, %s50
      %p64 = scmp.eq.s32.totalorder %s26, 5
      %p65 = por %p63, %p64
      %p67 = scmp.ne.s32.totalorder %s50, %s66
      %p68 = scmp.eq.s32.totalorder %s26, 0
      %p69 = por %p67, %p68
      %s71 = sadd.s32 %s70, 1
      %p74 = scmp.eq.s32.totalorder %s20, 5
      %p75 = scmp.ne.s32.totalorder %s70, %s72
      %p76 = scmp.eq.s32.totalorder %s20, 0
      %p77 = por %p75, %p76
      %p78 = scmp.ne.s32.totalorder %s70, %s72
      %p79 = scmp.eq.s32.totalorder %s25, 5
      %p80 = por %p78, %p79
      %p81 = scmp.ne.s32.totalorder %s72, %s73
      %p82 = scmp.eq.s32.totalorder %s25, 0
      %p83 = por %p81, %p82
      %p84 = scmp.ne.s32.totalorder %s72, %s73
      %p85 = scmp.eq.s32.totalorder %s26, 5
      %p86 = por %p84, %p85
      %p88 = scmp.ne.s32.totalorder %s73, %s87
      %p89 = scmp.eq.s32.totalorder %s26, 0
      %p90 = por %p88, %p89
      %s92 = sadd.s32 %s91, 1
      %p95 = scmp.eq.s32.totalorder %s20, 5
      %p96 = scmp.ne.s32.totalorder %s91, %s93
      %p97 = scmp.eq.s32.totalorder %s20, 0
      %p98 = por %p96, %p97
      %p99 = scmp.ne.s32.totalorder %s91, %s93
      %p100 = scmp.eq.s32.totalorder %s25, 5
      %p101 = por %p99, %p100
      %p102 = scmp.ne.s32.totalorder %s93, %s94
      %p103 = scmp.eq.s32.totalorder %s25, 0
      %p104 = por %p102, %p103
      %p105 = scmp.ne.s32.totalorder %s93, %s94
      %p106 = scmp.eq.s32.totalorder %s26, 5
      %p107 = por %p105, %p106
      %p109 = scmp.ne.s32.totalorder %s94, %s108
      %p110 = scmp.eq.s32.totalorder %s26, 0
      %p111 = por %p109, %p110
      %s113 = sadd.s32 %s112, 1
      %p116 = scmp.eq.s32.totalorder %s20, 5
      %p117 = scmp.ne.s32.totalorder %s112, %s114
      %p118 = scmp.eq.s32.totalorder %s20, 0
      %p119 = por %p117, %p118
      %p120 = scmp.ne.s32.totalorder %s112, %s114
      %p121 = scmp.eq.s32.totalorder %s25, 5
      %p122 = por %p120, %p121
      %p123 = scmp.ne.s32.totalorder %s114, %s115
      %p124 = scmp.eq.s32.totalorder %s25, 0
      %p125 = por %p123, %p124
      %p126 = scmp.ne.s32.totalorder %s114, %s115
      %p127 = scmp.eq.s32.totalorder %s26, 5
      %p128 = por %p126, %p127
      %p130 = scmp.ne.s32.totalorder %s115, %s129
      %p131 = scmp.eq.s32.totalorder %s26, 0
      %p132 = por %p130, %p131
      %s134 = sadd.s32 %s133, 1
      %p137 = scmp.eq.s32.totalorder %s20, 5
      %p138 = scmp.ne.s32.totalorder %s133, %s135
      %p139 = scmp.eq.s32.totalorder %s20, 0
      %p140 = por %p138, %p139
      %p141 = scmp.ne.s32.totalorder %s133, %s135
      %p142 = scmp.eq.s32.totalorder %s25, 5
      %p143 = por %p141, %p142
      %p144 = scmp.ne.s32.totalorder %s135, %s136
      %p145 = scmp.eq.s32.totalorder %s25, 0
      %p146 = por %p144, %p145
      %p147 = scmp.ne.s32.totalorder %s135, %s136
      %p148 = scmp.eq.s32.totalorder %s26, 5
      %p149 = por %p147, %p148
      %p151 = scmp.ne.s32.totalorder %s136, %s150
      %p152 = scmp.eq.s32.totalorder %s26, 0
      %p153 = por %p151, %p152
      %s155 = sadd.s32 %s154, 1
      %p158 = scmp.eq.s32.totalorder %s20, 5
      %p159 = scmp.ne.s32.totalorder %s154, %s156
      %p160 = scmp.eq.s32.totalorder %s20, 0
      %p161 = por %p159, %p160
      %p162 = scmp.ne.s32.totalorder %s154, %s156
      %p163 = scmp.eq.s32.totalorder %s25, 5
      %p164 = por %p162, %p163
      %p165 = scmp.ne.s32.totalorder %s156, %s157
      %p166 = scmp.eq.s32.totalorder %s25, 0
      %p167 = por %p165, %p166
      %p168 = scmp.ne.s32.totalorder %s156, %s157
      %p169 = scmp.eq.s32.totalorder %s26, 5
      %p170 = por %p168, %p169
      %p172 = scmp.ne.s32.totalorder %s157, %s171
      %p173 = scmp.eq.s32.totalorder %s26, 0
      %p174 = por %p172, %p173
      %s176 = sadd.s32 %s175, 1
      %p179 = scmp.eq.s32.totalorder %s20, 5
      %p180 = scmp.ne.s32.totalorder %s175, %s177
      %p181 = scmp.eq.s32.totalorder %s20, 0
      %p182 = por %p180, %p181
      %p183 = scmp.ne.s32.totalorder %s175, %s177
      %p184 = scmp.eq.s32.totalorder %s25, 5
      %p185 = por %p183, %p184
      %p186 = scmp.ne.s32.totalorder %s177, %s178
      %p187 = scmp.eq.s32.totalorder %s25, 0
      %p188 = por %p186, %p187
      %p189 = scmp.ne.s32.totalorder %s177, %s178
      %p190 = scmp.eq.s32.totalorder %s26, 5
      %p191 = por %p189, %p190
      %p193 = scmp.ne.s32.totalorder %s178, %s192
      %p194 = scmp.eq.s32.totalorder %s26, 0
      %p195 = por %p193, %p194
      %s197 = sadd.s32 %s196, 1
      %p200 = scmp.eq.s32.totalorder %s20, 5
      %p201 = scmp.ne.s32.totalorder %s196, %s198
      %p202 = scmp.eq.s32.totalorder %s20, 0
      %p203 = por %p201, %p202
      %p204 = scmp.ne.s32.totalorder %s196, %s198
      %p205 = scmp.eq.s32.totalorder %s25, 5
      %p206 = por %p204, %p205
      %p207 = scmp.ne.s32.totalorder %s198, %s199
      %p208 = scmp.eq.s32.totalorder %s25, 0
      %p209 = por %p207, %p208
      %p210 = scmp.ne.s32.totalorder %s198, %s199
      %p211 = scmp.eq.s32.totalorder %s26, 5
      %p212 = por %p210, %p211
      %p214 = scmp.ne.s32.totalorder %s199, %s213
      %p215 = scmp.eq.s32.totalorder %s26, 0
      %p216 = por %p214, %p215
      %s218 = sadd.s32 %s217, 1
      %p221 = scmp.eq.s32.totalorder %s20, 5
      %p222 = scmp.ne.s32.totalorder %s217, %s219
      %p223 = scmp.eq.s32.totalorder %s20, 0
      %p224 = por %p222, %p223
      %p225 = scmp.ne.s32.totalorder %s217, %s219
      %p226 = scmp.eq.s32.totalorder %s25, 5
      %p227 = por %p225, %p226
      %p228 = scmp.ne.s32.totalorder %s219, %s220
      %p229 = scmp.eq.s32.totalorder %s25, 0
      %p230 = por %p228, %p229
      %p231 = scmp.ne.s32.totalorder %s219, %s220
      %p232 = scmp.eq.s32.totalorder %s26, 5
      %p233 = por %p231, %p232
      %p235 = scmp.ne.s32.totalorder %s220, %s234
      %p236 = scmp.eq.s32.totalorder %s26, 0
      %p237 = por %p235, %p236
      %p238 = scmp.eq.s32.totalorder %s27, 2
      %s239 = scalar_select %p238, %s28, 0
      %p240 = scmp.eq.s32.totalorder %s39, 2
      %s241 = scalar_select %p240, %s35, 0
      %s242 = ssub.s32 %s239, %s241
      %p243 = scmp.eq.s32.totalorder %s242, 0
      %s245 = sadd.s32 %s244, 1
      %s246 = scalar_select %p243, %s244, %s245
      %p249 = pneg %p243
      %p250 = scmp.eq.s32.totalorder %s20, 5
      %p251 = por %p249, %p250
      %p252 = scmp.ne.s32.totalorder %s244, %s247
      %p253 = scmp.eq.s32.totalorder %s20, 0
      %p254 = por %p252, %p253
      %p255 = scmp.ne.s32.totalorder %s244, %s247
      %p256 = scmp.eq.s32.totalorder %s25, 5
      %p257 = por %p255, %p256
      %p258 = scmp.ne.s32.totalorder %s247, %s248
      %p259 = scmp.eq.s32.totalorder %s25, 0
      %p260 = por %p258, %p259
      %p261 = scmp.ne.s32.totalorder %s247, %s248
      %p262 = scmp.eq.s32.totalorder %s26, 5
      %p263 = por %p261, %p262
      %p265 = scmp.ne.s32.totalorder %s248, %s264
      %p266 = scmp.eq.s32.totalorder %s26, 0
      %p267 = por %p265, %p266
      %p268 = scmp.le.s32.totalorder 1, %s20
      %p269 = scmp.lt.s32.totalorder %s20, 7
      %p270 = pnand %p268, %p269
      %p271 = pneg %p270
      // Predicated region
      $region9: #{tpu_custom_call.1} parent=5 // pred_check
        _
      $region10: #{tpu_custom_call.1} parent=5 // pred_check_branch
        %273 = sbr.rel (%p270) target = $region12
      $region11: #{tpu_custom_call.1} parent=5 // pred_region
        %s274 = ssub.s32 %s20, 1
        // Predicated region
        $region13: #{tpu_custom_call.1} parent=11 // pred_check
          %p275 = pneg %p83
        $region14: #{tpu_custom_call.1} parent=11 // pred_check_branch
          %277 = sbr.rel (%p275) target = $region16
        $region15: #{tpu_custom_call.1} parent=11 // pred_region
          _
        $region16: #{tpu_custom_call.1} parent=11 // pred_fallthru
          _
        // Predicated region
        $region17: #{tpu_custom_call.1} parent=11 // pred_check
          %p278 = pneg %p104
        $region18: #{tpu_custom_call.1} parent=11 // pred_check_branch
          %280 = sbr.rel (%p278) target = $region20
        $region19: #{tpu_custom_call.1} parent=11 // pred_region
          _
        $region20: #{tpu_custom_call.1} parent=11 // pred_fallthru
          _
        // Predicated region
        $region21: #{tpu_custom_call.1} parent=11 // pred_check
          %p281 = pneg %p125
        $region22: #{tpu_custom_call.1} parent=11 // pred_check_branch
          %283 = sbr.rel (%p281) target = $region24
        $region23: #{tpu_custom_call.1} parent=11 // pred_region
          _
        $region24: #{tpu_custom_call.1} parent=11 // pred_fallthru
          _
        // Predicated region
        $region25: #{tpu_custom_call.1} parent=11 // pred_check
          %p284 = pneg %p146
        $region26: #{tpu_custom_call.1} parent=11 // pred_check_branch
          %286 = sbr.rel (%p284) target = $region28
        $region27: #{tpu_custom_call.1} parent=11 // pred_region
          _
        $region28: #{tpu_custom_call.1} parent=11 // pred_fallthru
          _
        // Predicated region
        $region29: #{tpu_custom_call.1} parent=11 // pred_check
          %p287 = pneg %p167
        $region30: #{tpu_custom_call.1} parent=11 // pred_check_branch
          %289 = sbr.rel (%p287) target = $region32
        $region31: #{tpu_custom_call.1} parent=11 // pred_region
          _
        $region32: #{tpu_custom_call.1} parent=11 // pred_fallthru
          _
        // Predicated region
        $region33: #{tpu_custom_call.1} parent=11 // pred_check
          %p290 = pneg %p188
        $region34: #{tpu_custom_call.1} parent=11 // pred_check_branch
          %292 = sbr.rel (%p290) target = $region36
        $region35: #{tpu_custom_call.1} parent=11 // pred_region
          _
        $region36: #{tpu_custom_call.1} parent=11 // pred_fallthru
          _
        // Predicated region
        $region37: #{tpu_custom_call.1} parent=11 // pred_check
          %p293 = pneg %p209
        $region38: #{tpu_custom_call.1} parent=11 // pred_check_branch
          %295 = sbr.rel (%p293) target = $region40
        $region39: #{tpu_custom_call.1} parent=11 // pred_region
          _
        $region40: #{tpu_custom_call.1} parent=11 // pred_fallthru
          _
        // Predicated region
        $region41: #{tpu_custom_call.1} parent=11 // pred_check
          %p296 = pneg %p230
        $region42: #{tpu_custom_call.1} parent=11 // pred_check_branch
          %298 = sbr.rel (%p296) target = $region44
        $region43: #{tpu_custom_call.1} parent=11 // pred_region
          _
        $region44: #{tpu_custom_call.1} parent=11 // pred_fallthru
          _
      $region12: #{tpu_custom_call.1} parent=5 // pred_fallthru
        _
      %p299 = scmp.lt.s32.totalorder %s20, 6
      // Predicated region
      $region45: #{tpu_custom_call.1} parent=5 // pred_check
        %p300 = pneg %p299
      $region46: #{tpu_custom_call.1} parent=5 // pred_check_branch
        %302 = sbr.rel (%p300) target = $region48
      $region47: #{tpu_custom_call.1} parent=5 // pred_region
        // Predicated region
        $region49: #{tpu_custom_call.1} parent=47 // pred_check
          %p303 = pneg %p56
        $region50: #{tpu_custom_call.1} parent=47 // pred_check_branch
          %305 = sbr.rel (%p303) target = $region52
        $region51: #{tpu_custom_call.1} parent=47 // pred_region
          %p306 = scmp.eq.s32.totalorder %s27, 0
          %s307 = scalar_select %p306, %s28, 1
          %s308 = smul.u32 16, %s307
          %p309 = scmp.lt.s32.totalorder %s308, 31
          %s310 = scalar_select %p309, %s308, 31
          %s311 = smul.addr %s310, 8
          %s312 = scalar_lea.vmem %s0, %s311
          %p313 = scmp.eq.s32.totalorder %s27, 0
          %s314 = scalar_select %p313, %s28, 1
          %s315 = smul.u32 16, %s314
        $region52: #{tpu_custom_call.1} parent=47 // pred_fallthru
          _
      $region48: #{tpu_custom_call.1} parent=5 // pred_fallthru
        _
      %p316 = scmp.le.s32.totalorder 1, %s20
      %p317 = scmp.lt.s32.totalorder %s20, 7
      %p318 = pnand %p316, %p317
      %p319 = pneg %p318
      // Predicated region
      $region53: #{tpu_custom_call.1} parent=5 // pred_check
        _
      $region54: #{tpu_custom_call.1} parent=5 // pred_check_branch
        %321 = sbr.rel (%p318) target = $region56
      $region55: #{tpu_custom_call.1} parent=5 // pred_region
        %s322 = ssub.s32 %s20, 1
        %p323 = scmp.eq.s32.totalorder %s29, 0
        %s324 = scalar_select %p323, %s30, 1
        %s325 = smul.u32 16, %s324
        %p326 = scmp.lt.s32.totalorder %s325, 31
        %s327 = scalar_select %p326, %s325, 31
        %s328 = smul.addr %s327, 8
        %s329 = scalar_lea.vmem %s0, %s328
        %p330 = pneg %p62
        %p331 = pneg %p59
        %p332 = pneg %p83
        %p333 = pneg %p80
        %p334 = pneg %p104
        %p335 = pneg %p101
        %p336 = pneg %p125
        %p337 = pneg %p122
        %p338 = pneg %p146
        %p339 = pneg %p143
        %p340 = pneg %p167
        %p341 = pneg %p164
        %p342 = pneg %p188
        %p343 = pneg %p185
        %p344 = pneg %p209
        %p345 = pneg %p206
        %p346 = pneg %p230
        %p347 = pneg %p227
        %p348 = pneg %p260
        %p349 = pneg %p257
        %s350 = sand.u32 %s247, 1
        %s351 = scalar_lea.sflag [#allocation10], %s350
        %s352 = sand.u32 %s247, 1
        %s353 = scalar_lea.vmem [#allocation9], %s352
        %p354 = scmp.eq.s32.totalorder %s29, 0
        %s355 = scalar_select %p354, %s30, 1
        %s356 = smul.u32 16, %s355
        %p357 = scmp.lt.s32.totalorder %s356, 31
        %s358 = scalar_select %p357, %s356, 31
        %s359 = smul.addr %s358, 8
        %s360 = scalar_lea.vmem %s0, %s359
        %p361 = scmp.eq.s32.totalorder %s29, 0
        %s362 = scalar_select %p361, %s30, 1
        %s363 = smul.u32 16, %s362
        %p364 = scmp.eq.s32.totalorder %s29, 2
        %s365 = scalar_select %p364, %s30, 0
        %s366 = smul.u32 %s30, 128
        %p367 = scmp.eq.s32.totalorder %s29, 0
        %p368 = scmp.eq.s32.totalorder %s30, 0
        %p369 = pnand %p367, %p368
        %p370 = pneg %p369
        // Predicated region
        $region57: #{tpu_custom_call.1} parent=55 // pred_check
          _
        $region58: #{tpu_custom_call.1} parent=55 // pred_check_branch
          %372 = sbr.rel (%p369) target = $region60
        $region59: #{tpu_custom_call.1} parent=55 // pred_region
          %vm373 = vcmask 7168
          %374 = vst.msk [vmem:[#allocation4] sm:$0xff] %vm373, 0.0
          %375 = vst.msk [vmem:[#allocation4 + $0x8] sm:$0xff] %vm373, 0.0
          %376 = vst.msk [vmem:[#allocation5] sm:$0xff] %vm373, 0.0
          %377 = vst.msk [vmem:[#allocation5 + $0x8] sm:$0xff] %vm373, 0.0
          %378 = vst.msk [vmem:[#allocation6] sm:$0xff] %vm373, 0.0
          %379 = vst.msk [vmem:[#allocation7] sm:$0xff] %vm373, 0.0
          %380 = vst [vmem:[%s353] sm:$0x1] 0.0
        $region60: #{tpu_custom_call.1} parent=55 // pred_fallthru
          _
        // Predicated region
        $region61: #{tpu_custom_call.1} parent=55 // pred_check
          %p381 = pneg %p367
        $region62: #{tpu_custom_call.1} parent=55 // pred_check_branch
          %383 = sbr.rel (%p381) target = $region64
        $region63: #{tpu_custom_call.1} parent=55 // pred_region
          %v384 = vld [vmem:[%s360] sm:$0xff]
          %v385 = vld [vmem:[%s360 + $0x8] sm:$0xff]
          %v386 = vld [vmem:[%s360 + $0x10] sm:$0xff]
          %v387 = vld [vmem:[%s360 + $0x18] sm:$0xff]
          %v388 = vld [vmem:[%s360 + $0x20] sm:$0xff]
          %v389 = vld [vmem:[%s360 + $0x28] sm:$0xff]
          %v390 = vld [vmem:[%s360 + $0x30] sm:$0xff]
          %v391 = vld [vmem:[%s360 + $0x38] sm:$0xff]
          %v392 = vld [vmem:[%s360 + $0x40] sm:$0xff]
          %v393 = vld [vmem:[%s360 + $0x48] sm:$0xff]
          %v394 = vld [vmem:[%s360 + $0x50] sm:$0xff]
          %v395 = vld [vmem:[%s360 + $0x58] sm:$0xff]
          %v396 = vld [vmem:[%s360 + $0x60] sm:$0xff]
          %v397 = vld [vmem:[%s360 + $0x68] sm:$0xff]
          %v398 = vld [vmem:[%s360 + $0x70] sm:$0xff]
          %v399 = vld [vmem:[%s360 + $0x78] sm:$0xff]
          %v400 = vld [vmem:[%s1] sm:$0xff]
          %v401 = vld [vmem:[%s1 + $0x8] sm:$0xff]
          %v402 = vld [vmem:[%s1 + $0x10] sm:$0xff]
          %v403 = vld [vmem:[%s1 + $0x18] sm:$0xff]
          %v404 = vld [vmem:[%s1 + $0x20] sm:$0xff]
          %v405 = vld [vmem:[%s1 + $0x28] sm:$0xff]
          %v406 = vld [vmem:[%s1 + $0x30] sm:$0xff]
          %v407 = vld [vmem:[%s1 + $0x38] sm:$0xff]
          %vm408 = vcmask 523264
          %v410 = vsel %vm408, %v384, 0
          %v413 = vsel %vm408, %v385, 0
          %v416 = vsel %vm408, %v386, 0
          %v419 = vsel %vm408, %v387, 0
          %v422 = vsel %vm408, %v388, 0
          %v425 = vsel %vm408, %v389, 0
          %v428 = vsel %vm408, %v390, 0
          %v431 = vsel %vm408, %v391, 0
          %v434 = vsel %vm408, %v392, 0
          %v437 = vsel %vm408, %v393, 0
          %v440 = vsel %vm408, %v394, 0
          %v443 = vsel %vm408, %v395, 0
          %v446 = vsel %vm408, %v396, 0
          %v449 = vsel %vm408, %v397, 0
          %v452 = vsel %vm408, %v398, 0
          %v455 = vsel %vm408, %v399, 0
          %457 = vmatpush.msra.mxu0 0.0
          %458 = vmatpush.msra.mxu0 0.0
          %459 = vmatpush.msra.mxu0 0.0
          %460 = vmatpush.msra.mxu0 0.0
          %461 = vmatpush.msra.mxu0 0.0
          %462 = vmatpush.msra.mxu0 0.0
          %463 = vmatpush.msra.mxu0 0.0
          %464 = vmatpush.msra.mxu0 0.0
          %465 = vmatpush.msra.mxu0 %v407
          %466 = vmatpush.msra.mxu0 %v406
          %467 = vmatpush.msra.mxu0 %v405
          %468 = vmatpush.msra.mxu0 %v404
          %469 = vmatpush.msra.mxu0 %v403
          %470 = vmatpush.msra.mxu0 %v402
          %471 = vmatpush.msra.mxu0 %v401
          %472 = vmatpush.msra.mxu0 %v400
          %473 = vmatmul.f32.gmra.mxu0 %v410
          %v474 = vpop.f32.mrf.mxu0
          %v475 = vadd.f32 0.0, %v474
          %476 = vmatmul.f32.gmra.mxu0 %v413
          %v477 = vpop.f32.mrf.mxu0
          %v478 = vadd.f32 0.0, %v477
          %479 = vmatmul.f32.gmra.mxu0 %v416
          %v480 = vpop.f32.mrf.mxu0
          %v481 = vadd.f32 0.0, %v480
          %482 = vmatmul.f32.gmra.mxu0 %v419
          %v483 = vpop.f32.mrf.mxu0
          %v484 = vadd.f32 0.0, %v483
          %485 = vmatmul.f32.gmra.mxu0 %v422
          %v486 = vpop.f32.mrf.mxu0
          %v487 = vadd.f32 0.0, %v486
          %488 = vmatmul.f32.gmra.mxu0 %v425
          %v489 = vpop.f32.mrf.mxu0
          %v490 = vadd.f32 0.0, %v489
          %491 = vmatmul.f32.gmra.mxu0 %v428
          %v492 = vpop.f32.mrf.mxu0
          %v493 = vadd.f32 0.0, %v492
          %494 = vmatmul.f32.gmra.mxu0 %v431
          %v495 = vpop.f32.mrf.mxu0
          %v496 = vadd.f32 0.0, %v495
          %497 = vmatmul.f32.gmra.mxu0 %v434
          %v498 = vpop.f32.mrf.mxu0
          %v499 = vadd.f32 0.0, %v498
          %500 = vmatmul.f32.gmra.mxu0 %v437
          %v501 = vpop.f32.mrf.mxu0
          %v502 = vadd.f32 0.0, %v501
          %503 = vmatmul.f32.gmra.mxu0 %v440
          %v504 = vpop.f32.mrf.mxu0
          %v505 = vadd.f32 0.0, %v504
          %506 = vmatmul.f32.gmra.mxu0 %v443
          %v507 = vpop.f32.mrf.mxu0
          %v508 = vadd.f32 0.0, %v507
          %509 = vmatmul.f32.gmra.mxu0 %v446
          %v510 = vpop.f32.mrf.mxu0
          %v511 = vadd.f32 0.0, %v510
          %512 = vmatmul.f32.gmra.mxu0 %v449
          %v513 = vpop.f32.mrf.mxu0
          %v514 = vadd.f32 0.0, %v513
          %515 = vmatmul.f32.gmra.mxu0 %v452
          %v516 = vpop.f32.mrf.mxu0
          %v517 = vadd.f32 0.0, %v516
          %518 = vmatmul.f32.gmra.mxu0 %v455
          %v519 = vpop.f32.mrf.mxu0
          %v520 = vadd.f32 0.0, %v519
          %521 = vdwg.mxu0
          %522 = vxpose.xlu0.b32.start [1/16] %v475, 128
          %523 = vxpose.xlu0.b32.cont [2/16] %v478, 128
          %524 = vxpose.xlu0.b32.cont [3/16] %v481, 128
          %525 = vxpose.xlu0.b32.cont [4/16] %v484, 128
          %526 = vxpose.xlu0.b32.cont [5/16] %v487, 128
          %527 = vxpose.xlu0.b32.cont [6/16] %v490, 128
          %528 = vxpose.xlu0.b32.cont [7/16] %v493, 128
          %529 = vxpose.xlu0.b32.cont [8/16] %v496, 128
          %530 = vxpose.xlu0.b32.cont [9/16] %v499, 128
          %531 = vxpose.xlu0.b32.cont [10/16] %v502, 128
          %532 = vxpose.xlu0.b32.cont [11/16] %v505, 128
          %533 = vxpose.xlu0.b32.cont [12/16] %v508, 128
          %534 = vxpose.xlu0.b32.cont [13/16] %v511, 128
          %535 = vxpose.xlu0.b32.cont [14/16] %v514, 128
          %536 = vxpose.xlu0.b32.cont [15/16] %v517, 128
          %537 = vxpose.xlu0.b32.end [16/16] %v520, 128
          %v538 = vpop.trf.xlu0
          %v539 = vpop.trf.xlu0
          %v540 = vpop.trf.xlu0
          %v541 = vpop.trf.xlu0
          %v542 = vpop.trf.xlu0
          %v543 = vpop.trf.xlu0
          %v544 = vpop.trf.xlu0
          %v545 = vpop.trf.xlu0
          %v546 = vpop.trf.xlu0
          %v547 = vpop.trf.xlu0
          %v548 = vpop.trf.xlu0
          %v549 = vpop.trf.xlu0
          %v550 = vpop.trf.xlu0
          %v551 = vpop.trf.xlu0
          %v552 = vpop.trf.xlu0
          %v553 = vpop.trf.xlu0
          %s554 = sshra.s32 %s366, 7
          %s555 = sand.u32 %s366, 127
          %s556 = smul.addr %s554, 8
          %s557 = scalar_lea.vmem [#allocation2], %s556
          %558 = vst [vmem:[%s557] sm:$0xff] %v538
          %559 = vst [vmem:[%s557 + $0x10] sm:$0xff] %v539
          %v560 = vld [vmem:[#allocation4] sm:$0xff]
          %v561 = vld [vmem:[#allocation4 + $0x8] sm:$0xff]
          %562 = vadd.xlane.f32.xlu0 %v538
          %v563 = vpop.xlane.xlu0 %562
          %564 = vadd.xlane.f32.xlu0 %v539
          %v565 = vpop.xlane.xlu0 %564
          %v566 = vadd.f32 %v560, %v563
          %v567 = vadd.f32 %v561, %v565
          %vm568 = vcmask 7168
          %569 = vst.msk [vmem:[#allocation4] sm:$0xff] %vm568, %v566
          %570 = vst.msk [vmem:[#allocation4 + $0x8] sm:$0xff] %vm568, %v567
          %v571 = vld [vmem:[#allocation5] sm:$0xff]
          %v572 = vld [vmem:[#allocation5 + $0x8] sm:$0xff]
          %v573 = vmul.f32 %v538, %v538
          %v574 = vmul.f32 %v539, %v539
          %575 = vadd.xlane.f32.xlu0 %v573
          %v576 = vpop.xlane.xlu0 %575
          %577 = vadd.xlane.f32.xlu0 %v574
          %v578 = vpop.xlane.xlu0 %577
          %v579 = vadd.f32 %v571, %v576
          %v580 = vadd.f32 %v572, %v578
          %581 = vst.msk [vmem:[#allocation5] sm:$0xff] %vm568, %v579
          %582 = vst.msk [vmem:[#allocation5 + $0x8] sm:$0xff] %vm568, %v580
        $region64: #{tpu_custom_call.1} parent=55 // pred_fallthru
          _
        %p583 = scmp.eq.s32.totalorder %s29, 1
        // Predicated region
        $region65: #{tpu_custom_call.1} parent=55 // pred_check
          %p584 = pneg %p583
        $region66: #{tpu_custom_call.1} parent=55 // pred_check_branch
          %586 = sbr.rel (%p584) target = $region68
        $region67: #{tpu_custom_call.1} parent=55 // pred_region
          // Predicated region
          $region69: #{tpu_custom_call.1} parent=67 // pred_check
            %p587 = pneg %p368
          $region70: #{tpu_custom_call.1} parent=67 // pred_check_branch
            %589 = sbr.rel (%p587) target = $region72
          $region71: #{tpu_custom_call.1} parent=67 // pred_region
            %v590 = vld [vmem:[#allocation4] sm:$0xff]
            %v591 = vld [vmem:[#allocation4 + $0x8] sm:$0xff]
            %v592 = vmul.f32 %v590, 0.005
            %v593 = vmul.f32 %v591, 0.005
            %v594 = vld [vmem:[#allocation5] sm:$0xff]
            %v595 = vld [vmem:[#allocation5 + $0x8] sm:$0xff]
            %v596 = vmul.f32 %v594, 0.005
            %v597 = vmul.f32 %v595, 0.005
            %v598 = vmul.f32 %v592, %v592
            %v599 = vmul.f32 %v593, %v593
            %v600 = vsub.f32 %v596, %v598
            %v601 = vsub.f32 %v597, %v599
            %v602 = vmax.f32 %v600, 0.0
            %v603 = vmax.f32 %v601, 0.0
            %v604 = vld [vmem:[%s2] sm:$0xff]
            %v605 = vld [vmem:[%s2 + $0x8] sm:$0xff]
            %v606 = vadd.f32 %v602, 1e-05
            %v607 = vadd.f32 %v603, 1e-05
            %v608 = vrsqrt.pop %v606
            %v609 = vmul.f32 %v608, %v606
            %v610 = vmul.f32 %v609, %v608
            %v611 = vmul.f32 0.5, %v610
            %v612 = vsub.f32 1.5, %v611
            %v613 = vmul.f32 %v608, %v612
            %vm614 = vweird.f32 %v606
            %vm615 = vweird.f32 %v608
            %vm616 = vmor %vm614, %vm615
            %v617 = vsel %vm616, %v608, %v613
            %v618 = vrsqrt.pop %v607
            %v619 = vmul.f32 %v618, %v607
            %v620 = vmul.f32 %v619, %v618
            %v621 = vmul.f32 0.5, %v620
            %v622 = vsub.f32 1.5, %v621
            %v623 = vmul.f32 %v618, %v622
            %vm624 = vweird.f32 %v607
            %vm625 = vweird.f32 %v618
            %vm626 = vmor %vm624, %vm625
            %v627 = vsel %vm626, %v618, %v623
            %v628 = vmul.f32 %v604, %v617
            %v629 = vmul.f32 %v605, %v627
            %vm630 = vcmask 7168
            %631 = vst.msk [vmem:[#allocation5] sm:$0xff] %vm630, %v628
            %632 = vst.msk [vmem:[#allocation5 + $0x8] sm:$0xff] %vm630, %v629
            %v633 = vld [vmem:[%s3] sm:$0xff]
            %v634 = vld [vmem:[%s3 + $0x8] sm:$0xff]
            %v635 = vmul.f32 %v592, %v628
            %v636 = vmul.f32 %v593, %v629
            %v637 = vsub.f32 %v633, %v635
            %v638 = vsub.f32 %v634, %v636
            %639 = vst.msk [vmem:[#allocation4] sm:$0xff] %vm630, %v637
            %640 = vst.msk [vmem:[#allocation4 + $0x8] sm:$0xff] %vm630, %v638
          $region72: #{tpu_custom_call.1} parent=67 // pred_fallthru
            _
          %s641 = sshra.s32 %s366, 7
          %s642 = sand.u32 %s366, 127
          %s643 = smul.addr %s641, 8
          %s644 = scalar_lea.vmem [#allocation2], %s643
          %v645 = vld [vmem:[%s644] sm:$0xff]
          %v646 = vld [vmem:[%s644 + $0x10] sm:$0xff]
          %v647 = vlaneseq
          %v648 = vand.u32 %v647, 127
          %v649 = vstv %s366
          %v650 = vadd.s32 %v649, %v648
          %vm651 = vcmp.lt.s32.totalorder %v650, 200
          %v652 = vld [vmem:[#allocation5] sm:$0xff]
          %v653 = vld [vmem:[#allocation5 + $0x8] sm:$0xff]
          %655 = vset.pattern.permute.xlu0 0
          %656 = vperm.xlu0 %655, %v652
          %v657 = vpop.permute.xlu0 %656
          %660 = vset.pattern.permute.xlu0 0
          %661 = vperm.xlu0 %660, %v653
          %v662 = vpop.permute.xlu0 %661
          %v664 = vmul.f32 %v645, %v657
          %v665 = vmul.f32 %v646, %v662
          %v666 = vld [vmem:[#allocation4] sm:$0xff]
          %v667 = vld [vmem:[#allocation4 + $0x8] sm:$0xff]
          %669 = vset.pattern.permute.xlu0 0
          %670 = vperm.xlu0 %669, %v666
          %v671 = vpop.permute.xlu0 %670
          %674 = vset.pattern.permute.xlu0 0
          %675 = vperm.xlu0 %674, %v667
          %v676 = vpop.permute.xlu0 %675
          %v678 = vadd.f32 %v664, %v671
          %v679 = vadd.f32 %v665, %v676
          %v680 = vsel %vm651, 1, 0
          %vm681 = vcmp.eq.s32.totalorder %v680, 1
          %v682 = vsel %vm681, %v678, 0.0
          %v683 = vsel %vm681, %v679, 0.0
          %v684 = vld [vmem:[%s4] sm:$0xff]
          %vm685 = vcmask 130048
          %v687 = vsel %vm685, %v684, 0
          %689 = vmatpush.msra.mxu0 0.0
          %690 = vmatpush.msra.mxu0 0.0
          %691 = vmatpush.msra.mxu0 0.0
          %692 = vmatpush.msra.mxu0 0.0
          %693 = vmatpush.msra.mxu0 0.0
          %694 = vmatpush.msra.mxu0 0.0
          %695 = vmatpush.msra.mxu0 0.0
          %696 = vmatpush.msra.mxu0 0.0
          %697 = vmatpush.msra.mxu0 0.0
          %698 = vmatpush.msra.mxu0 0.0
          %699 = vmatpush.msra.mxu0 0.0
          %700 = vmatpush.msra.mxu0 0.0
          %701 = vmatpush.msra.mxu0 0.0
          %702 = vmatpush.msra.mxu0 0.0
          %703 = vmatpush.msra.mxu0 %v683
          %704 = vmatpush.msra.mxu0 %v682
          %705 = vmatmul.f32.gmra.mxu0 %v687
          %v706 = vpop.f32.mrf.mxu0
          %v707 = vadd.f32 0.0, %v706
          %708 = vdwg.mxu0
          %s709 = smul.addr %s641, 8
          %s710 = scalar_lea.vmem [#allocation3], %s709
          %711 = vst [vmem:[%s710] sm:$0xff] %v707
          %v712 = vld [vmem:[#allocation6] sm:$0xff]
          %713 = vadd.xlane.f32.xlu0 %v707
          %v714 = vpop.xlane.xlu0 %713
          %v715 = vadd.f32 %v712, %v714
          %vm716 = vcmask 7168
          %717 = vst.msk [vmem:[#allocation6] sm:$0xff] %vm716, %v715
          %v718 = vld [vmem:[#allocation7] sm:$0xff]
          %v719 = vmul.f32 %v707, %v707
          %720 = vadd.xlane.f32.xlu0 %v719
          %v721 = vpop.xlane.xlu0 %720
          %v722 = vadd.f32 %v718, %v721
          %723 = vst.msk [vmem:[#allocation7] sm:$0xff] %vm716, %v722
        $region68: #{tpu_custom_call.1} parent=55 // pred_fallthru
          _
        %p724 = scmp.eq.s32.totalorder %s29, 2
        // Predicated region
        $region73: #{tpu_custom_call.1} parent=55 // pred_check
          %p725 = pneg %p724
        $region74: #{tpu_custom_call.1} parent=55 // pred_check_branch
          %727 = sbr.rel (%p725) target = $region76
        $region75: #{tpu_custom_call.1} parent=55 // pred_region
          // Predicated region
          $region77: #{tpu_custom_call.1} parent=75 // pred_check
            %p728 = pneg %p368
          $region78: #{tpu_custom_call.1} parent=75 // pred_check_branch
            %730 = sbr.rel (%p728) target = $region80
          $region79: #{tpu_custom_call.1} parent=75 // pred_region
            %v731 = vld [vmem:[#allocation6] sm:$0xff]
            %v732 = vmul.f32 %v731, 0.005
            %v733 = vld [vmem:[#allocation7] sm:$0xff]
            %v734 = vmul.f32 %v733, 0.005
            %v735 = vmul.f32 %v732, %v732
            %v736 = vsub.f32 %v734, %v735
            %v737 = vmax.f32 %v736, 0.0
            %v738 = vld [vmem:[%s5] sm:$0xff]
            %v739 = vadd.f32 %v737, 1e-05
            %v740 = vrsqrt.pop %v739
            %v741 = vmul.f32 %v740, %v739
            %v742 = vmul.f32 %v741, %v740
            %v743 = vmul.f32 0.5, %v742
            %v744 = vsub.f32 1.5, %v743
            %v745 = vmul.f32 %v740, %v744
            %vm746 = vweird.f32 %v739
            %vm747 = vweird.f32 %v740
            %vm748 = vmor %vm746, %vm747
            %v749 = vsel %vm748, %v740, %v745
            %v750 = vmul.f32 %v738, %v749
            %vm751 = vcmask 7168
            %752 = vst.msk [vmem:[#allocation7] sm:$0xff] %vm751, %v750
            %v753 = vld [vmem:[%s6] sm:$0xff]
            %v754 = vmul.f32 %v732, %v750
            %v755 = vsub.f32 %v753, %v754
            %756 = vst.msk [vmem:[#allocation6] sm:$0xff] %vm751, %v755
          $region80: #{tpu_custom_call.1} parent=75 // pred_fallthru
            _
          %s757 = sshra.s32 %s366, 7
          %s758 = sand.u32 %s366, 127
          %s759 = smul.addr %s757, 8
          %s760 = scalar_lea.vmem [#allocation3], %s759
          %v761 = vld [vmem:[%s760] sm:$0xff]
          %v762 = vld [vmem:[#allocation7] sm:$0xff]
          %764 = vset.pattern.permute.xlu0 0
          %765 = vperm.xlu0 %764, %v762
          %v766 = vpop.permute.xlu0 %765
          %v768 = vmul.f32 %v761, %v766
          %v769 = vld [vmem:[#allocation6] sm:$0xff]
          %771 = vset.pattern.permute.xlu0 0
          %772 = vperm.xlu0 %771, %v769
          %v773 = vpop.permute.xlu0 %772
          %v775 = vadd.f32 %v768, %v773
          %v776 = vld [vmem:[%s7] sm:$0xff]
          %778 = vset.pattern.permute.xlu0 0
          %779 = vperm.xlu0 %778, %v776
          %v780 = vpop.permute.xlu0 %779
          %v782 = vmul.f32 %v775, %v780
          %v783 = vrot.slane %v782, 4
          %v784 = vadd.f32 %v782, %v783
          %v785 = vrot.slane %v784, 2
          %v786 = vadd.f32 %v784, %v785
          %v787 = vrot.slane %v786, 1
          %v788 = vadd.f32 %v786, %v787
          %v789 = vld [vmem:[#allocation8] sm:$0x1]
          %791 = vset.pattern.permute.xlu0 0
          %792 = vperm.xlu0 %791, %v789
          %v793 = vpop.permute.xlu0 %792
          %v795 = vperm.slane %v793, 0
          %v796 = vadd.f32 %v788, %v795
          %v797 = vxor.u32 %v796, 2147483648
          %v798 = vmul.f32 %v797, 1.442695
          %v799 = vpow.pop %v798
          %v800 = vadd.f32 %v799, 1.0
          %v801 = vrcp.pop %v800
          %v802 = vmul.f32 %v800, %v801
          %v803 = vsub.f32 1.0, %v802
          %v804 = vmul.f32 %v801, %v803
          %v805 = vadd.f32 %v801, %v804
          %vm806 = vweird.f32 %v800
          %vm807 = vweird.f32 %v801
          %vm808 = vmor %vm806, %vm807
          %v809 = vsel %vm808, %v801, %v805
          %v810 = vand.u32 2147483647, %v800
          %vm811 = vcmp.eq.f32.partialorder %v810, 8.507059e+37
          %v812 = vand.u32 %v800, 2147483648
          %v813 = vor.u32 1.1754944e-38, %v812
          %v814 = vsel %vm811, %v813, %v809
          %v815 = vmul.f32 1.0, %v814
          %v816 = vmul.f32 %v815, 100.0
          %817 = vst [vmem:[%s353] sm:$0x1] %v816
        $region76: #{tpu_custom_call.1} parent=55 // pred_fallthru
          _
        %s818 = sand.u32 %s247, 1
        %s819 = scalar_lea.sflag [#allocation10], %s818
        %s820 = sand.u32 %s247, 1
        %s821 = scalar_lea.vmem [#allocation9], %s820
        // Predicated region
        $region81: #{tpu_custom_call.1} parent=55 // pred_check
          %p822 = pneg %p257
        $region82: #{tpu_custom_call.1} parent=55 // pred_check_branch
          %824 = sbr.rel (%p822) target = $region84
        $region83: #{tpu_custom_call.1} parent=55 // pred_region
          %p825 = scmp.eq.s32.totalorder %s29, 2
          %s826 = scalar_select %p825, %s30, 0
          %828 = vsyncadd %s819, 0
          %s829 = scalar_lea.hbm %s9, %s826
          %s831 = sshll.u32 %s821, 4
          %s832 = int_to_ptr.vmem [resolvable:$true] %s831
          %s833 = sshll.u32 %s829, 4
          %s834 = int_to_ptr.hbm [resolvable:$true] %s833
          %836 = dma.vmem_to_hbm [thread:$0]  %s832, 16, %s834, %s819
        $region84: #{tpu_custom_call.1} parent=55 // pred_fallthru
          _
      $region56: #{tpu_custom_call.1} parent=5 // pred_fallthru
        _
      %p837 = scmp.le.s32.totalorder 2, %s20
      // Predicated region
      $region85: #{tpu_custom_call.1} parent=5 // pred_check
        %p838 = pneg %p837
      $region86: #{tpu_custom_call.1} parent=5 // pred_check_branch
        %840 = sbr.rel (%p838) target = $region88
      $region87: #{tpu_custom_call.1} parent=5 // pred_region
        %s841 = ssub.s32 %s20, 2
        // Predicated region
        $region89: #{tpu_custom_call.1} parent=87 // pred_check
          %p842 = pneg %p263
        $region90: #{tpu_custom_call.1} parent=87 // pred_check_branch
          %844 = sbr.rel (%p842) target = $region92
        $region91: #{tpu_custom_call.1} parent=87 // pred_region
          %s845 = sand.u32 %s248, 1
          %s846 = scalar_lea.sflag [#allocation10], %s845
          %s847 = sand.u32 %s248, 1
          %s848 = scalar_lea.vmem [#allocation9], %s847
          %850 = dma.done %s846, 16
        $region92: #{tpu_custom_call.1} parent=87 // pred_fallthru
          _
      $region88: #{tpu_custom_call.1} parent=5 // pred_fallthru
        _
    $region6: #{tpu_custom_call.1} parent=1 // loop_footer
      %s24 = sadd.s32 1, %s20
    $region7: #{tpu_custom_call.1} parent=1 // loop_footer_branch
      %19 = sbr.rel target = $region3
    $region8: #{tpu_custom_call.1} parent=1 // loop_exit
      _
    %851 = vsyncpa [#allocation10], 1
    %s852 = scalar_lea.sflag [#allocation10], 1
    %853 = vsyncpa %s852, 1

</llo_original>
